<compile_context>
chip_gen: v5e
topology: v5e:2x2
jax: 0.10.0
libtpu: 0.0.40
codegen_flags: <defaults>
</compile_context>

<pallas_src>
import jax
import jax.numpy as jnp
from jax.experimental import pallas as pl
from jax.experimental.pallas import tpu as pltpu

EPS = 1e-5       # nn.BatchNorm2d default eps
C_TILE = 128     # channel block (lane width)


def head_kernel(x_ref, w1_ref, b1_ref, w2_ref, b2_ref, out_ref, acc_ref):
    """x_ref: (B_TILE, C_TILE, HW); w1_ref: (C_TILE, HID); acc_ref: (B_TILE, HID)."""
    ci = pl.program_id(1)

    @pl.when(ci == 0)
    def _init():
        acc_ref[...] = jnp.zeros_like(acc_ref)

    # Global average pool, expressed as a spatial SUM over HW for this channel block
    # (the 1/HW factor and the BN scale are folded into w1 by the wrapper).
    pooled = jnp.sum(x_ref[...], axis=-1)                              # (B_TILE, C_TILE)
    acc_ref[...] += jnp.dot(pooled, w1_ref[...],
                            preferred_element_type=jnp.float32)

    @pl.when(ci == pl.num_programs(1) - 1)
    def _finalize():
        # Linear(512, 512) bias + ReLU   (Dropout(0.5) is identity in eval mode)
        h = jnp.maximum(acc_ref[...] + b1_ref[...], 0.0)               # (B_TILE, HID)
        # Linear(512, num_classes), output padded to 128 lanes for dense stores.
        out = jnp.dot(h, w2_ref[...], preferred_element_type=jnp.float32) + b2_ref[...]
        out_ref[...] = out.astype(out_ref.dtype)


def enhanced_model_head(x_nchw, params):
    """x_nchw: (B, 512, H, W) float32 feature map. Returns (B, num_classes) float32."""
    gamma, beta, rmean, rvar, w1, b1, w2, b2 = params
    B, C, H, W = x_nchw.shape
    HW = H * W
    HID = w1.shape[1]
    num_classes = w2.shape[1]
    assert C % C_TILE == 0, "head expects channels to be a multiple of 128"
    assert HID % 128 == 0

    # ---- Fold eval-mode BatchNorm + 1/HW mean factor into Linear1 (f32, done once) ----
    scale = gamma.reshape(-1) * jax.lax.rsqrt(rvar.reshape(-1) + EPS)      # (C,)
    shift = beta.reshape(-1) - rmean.reshape(-1) * scale                   # (C,)
    w1_fold = (scale / HW)[:, None] * w1                                   # (C, HID)
    b1_fold = b1.reshape(1, -1) + shift[None, :] @ w1                      # (1, HID)

    # ---- Pad the classifier output to a full 128-lane slab (dense vst) ----
    out_pad = ((num_classes + 127) // 128) * 128
    w2_pad = jnp.zeros((HID, out_pad), w2.dtype).at[:, :num_classes].set(w2)
    b2_pad = jnp.zeros((1, out_pad), jnp.float32).at[:, :num_classes].set(b2.reshape(1, -1))

    # NCHW consumed directly; only a free contiguous reshape, no transpose / extra HBM pass.
    x = x_nchw.reshape(B, C, HW)

    b_tile = 8 if B % 8 == 0 else B
    n_b = B // b_tile
    n_c = C // C_TILE

    out_padded = pl.pallas_call(
        head_kernel,
        out_shape=jax.ShapeDtypeStruct((B, out_pad), jnp.float32),
        grid_spec=pltpu.PrefetchScalarGridSpec(
            num_scalar_prefetch=0,
            grid=(n_b, n_c),
            in_specs=[
                pl.BlockSpec((b_tile, C_TILE, HW), lambda bi, ci: (bi, ci, 0)),  # x
                pl.BlockSpec((C_TILE, HID), lambda bi, ci: (ci, 0)),             # w1_fold
                pl.BlockSpec((1, HID), lambda bi, ci: (0, 0)),                   # b1_fold
                pl.BlockSpec((HID, out_pad), lambda bi, ci: (0, 0)),             # w2_pad
                pl.BlockSpec((1, out_pad), lambda bi, ci: (0, 0)),               # b2_pad
            ],
            out_specs=pl.BlockSpec((b_tile, out_pad), lambda bi, ci: (bi, 0)),
            scratch_shapes=[pltpu.VMEM((b_tile, HID), jnp.float32)],
        ),
        compiler_params=pltpu.CompilerParams(
            dimension_semantics=("parallel", "arbitrary"),
            vmem_limit_bytes=32 * 1024 * 1024,
        ),
    )(x, w1_fold, b1_fold, w2_pad, b2_pad)

    return out_padded[:, :num_classes]


def reference_head(x_nchw, params):
    """Pure-JAX reference with faithful PyTorch eval-mode semantics."""
    gamma, beta, rmean, rvar, w1, b1, w2, b2 = params
    scale = gamma / jnp.sqrt(rvar + EPS)
    shift = beta - rmean * scale
    xb = x_nchw * scale.reshape(1, -1, 1, 1) + shift.reshape(1, -1, 1, 1)
    pooled = jnp.mean(xb, axis=(2, 3))                                  # (B, C)
    h = jnp.maximum(pooled @ w1 + b1, 0.0)                              # ReLU; Dropout = id
    return h @ w2 + b2


if __name__ == "__main__":
    B, C, H, W = 2, 512, 4, 4
    num_classes = 10

    key = jax.random.PRNGKey(0)
    k_x, k_g, k_b, k_m, k_v, k_w1, k_b1, k_w2, k_b2 = jax.random.split(key, 9)

    # Deterministic "feature map" (what base_model.features would emit).
    x = jax.random.normal(k_x, (B, C, H, W), jnp.float32)

    # Non-trivial BatchNorm running stats / affine so the fold is actually exercised.
    gamma = 1.0 + 0.1 * jax.random.normal(k_g, (C,), jnp.float32)
    beta = 0.1 * jax.random.normal(k_b, (C,), jnp.float32)
    rmean = 0.1 * jax.random.normal(k_m, (C,), jnp.float32)
    rvar = jnp.abs(jax.random.normal(k_v, (C,), jnp.float32)) + 0.5

    # Linear layers (deterministic small random weights / biases).
    w1 = jax.random.normal(k_w1, (C, 512), jnp.float32) * 0.02
    b1 = 0.01 * jax.random.normal(k_b1, (512,), jnp.float32)
    w2 = jax.random.normal(k_w2, (512, num_classes), jnp.float32) * 0.02
    b2 = 0.01 * jax.random.normal(k_b2, (num_classes,), jnp.float32)

    params = (gamma, beta, rmean, rvar, w1, b1, w2, b2)

    out = jax.block_until_ready(enhanced_model_head(x, params))
    assert out.shape == (B, num_classes)

    ref = jax.block_until_ready(reference_head(x, params))
    assert jnp.allclose(out, ref, atol=1e-4, rtol=1e-4), "kernel mismatch vs reference"

    print("KERNEL_OK")
</pallas_src>

<mosaic_0001>
module attributes {stable_mosaic.version = 11 : i64} {
  func.func @head_kernel(%arg0: i32, %arg1: i32, %arg2: memref<2x128x16xf32, #tpu.memory_space<vmem>>, %arg3: memref<128x512xf32, #tpu.memory_space<vmem>>, %arg4: memref<1x512xf32, #tpu.memory_space<vmem>>, %arg5: memref<512x128xf32, #tpu.memory_space<vmem>>, %arg6: memref<1x128xf32, #tpu.memory_space<vmem>>, %arg7: memref<2x128xf32, #tpu.memory_space<vmem>>, %arg8: memref<2x512xf32, #tpu.memory_space<vmem>>) attributes {dimension_semantics = [#tpu.dimension_semantics<parallel>, #tpu.dimension_semantics<arbitrary>], iteration_bounds = array<i64: 1, 4>, scalar_prefetch = 0 : i64, scratch_operands = 1 : i64, tpu.core_type = #tpu.core_type<tc>, window_params = [{transform_indices = @transform_0, window_bounds = array<i64: 2, 128, 16>}, {transform_indices = @transform_1, window_bounds = array<i64: 128, 512>}, {pipeline_mode = #tpu.pipeline_mode<synchronous>, transform_indices = @transform_2, window_bounds = array<i64: 1, 512>}, {pipeline_mode = #tpu.pipeline_mode<synchronous>, transform_indices = @transform_3, window_bounds = array<i64: 512, 128>}, {pipeline_mode = #tpu.pipeline_mode<synchronous>, transform_indices = @transform_4, window_bounds = array<i64: 1, 128>}, {transform_indices = @transform_5, window_bounds = array<i64: 2, 128>}]} {
    %c0_i32 = arith.constant 0 : i32
    %0 = arith.cmpi eq, %arg1, %c0_i32 : i32
    %1 = arith.extui %0 : i1 to i32
    %c0_i32_0 = arith.constant 0 : i32
    %2 = arith.cmpi ne, %1, %c0_i32_0 : i32
    scf.if %2 {
      %cst_11 = arith.constant 0.000000e+00 : f32
      %13 = vector.broadcast %cst_11 : f32 to vector<2x512xf32>
      %c0_12 = arith.constant 0 : index
      %c0_13 = arith.constant 0 : index
      %14 = vector.load %arg8[%c0_12, %c0_13] : memref<2x512xf32, #tpu.memory_space<vmem>>, vector<2x512xf32>
      tpu.vector_store %arg8[%c0_12, %c0_13], %13 {strides = array<i32>} : memref<2x512xf32, #tpu.memory_space<vmem>>, vector<2x512xf32>,
    } else {
    }
    %c0 = arith.constant 0 : index
    %c0_1 = arith.constant 0 : index
    %c0_2 = arith.constant 0 : index
    %3 = vector.load %arg2[%c0, %c0_1, %c0_2] : memref<2x128x16xf32, #tpu.memory_space<vmem>>, vector<2x128x16xf32>
    %cst = arith.constant dense<0.000000e+00> : vector<2x128xf32>
    %4 = vector.multi_reduction <add>, %3, %cst [2] : vector<2x128x16xf32> to vector<2x128xf32>
    %c0_3 = arith.constant 0 : index
    %c0_4 = arith.constant 0 : index
    %5 = vector.load %arg8[%c0_3, %c0_4] : memref<2x512xf32, #tpu.memory_space<vmem>>, vector<2x512xf32>
    %c0_5 = arith.constant 0 : index
    %c0_6 = arith.constant 0 : index
    %6 = vector.load %arg3[%c0_5, %c0_6] : memref<128x512xf32, #tpu.memory_space<vmem>>, vector<128x512xf32>
    %cst_7 = arith.constant dense<0.000000e+00> : vector<2x512xf32>
    %7 = tpu.matmul %4, %6, %cst_7 {dimension_numbers = #tpu.dot_dimension_numbers<[1], [0], [0], [1], [0, 0, 1, 1], [], []>} : vector<2x128xf32>, vector<128x512xf32>, vector<2x512xf32> -> vector<2x512xf32>
    %8 = arith.addf %5, %7 : vector<2x512xf32>
    %c0_8 = arith.constant 0 : index
    %c0_9 = arith.constant 0 : index
    %9 = vector.load %arg8[%c0_8, %c0_9] : memref<2x512xf32, #tpu.memory_space<vmem>>, vector<2x512xf32>
    tpu.vector_store %arg8[%c0_8, %c0_9], %8 {strides = array<i32>} : memref<2x512xf32, #tpu.memory_space<vmem>>, vector<2x512xf32>,
    %c3_i32 = arith.constant 3 : i32
    %10 = arith.cmpi eq, %arg1, %c3_i32 : i32
    %11 = arith.extui %10 : i1 to i32
    %c0_i32_10 = arith.constant 0 : i32
    %12 = arith.cmpi ne, %11, %c0_i32_10 : i32
    scf.if %12 {
      %c0_11 = arith.constant 0 : index
      %c0_12 = arith.constant 0 : index
      %13 = vector.load %arg8[%c0_11, %c0_12] : memref<2x512xf32, #tpu.memory_space<vmem>>, vector<2x512xf32>
      %c0_13 = arith.constant 0 : index
      %c0_14 = arith.constant 0 : index
      %14 = vector.load %arg4[%c0_13, %c0_14] : memref<1x512xf32, #tpu.memory_space<vmem>>, vector<1x512xf32>
      %15 = vector.broadcast %14 : vector<1x512xf32> to vector<2x512xf32>
      %16 = arith.addf %13, %15 : vector<2x512xf32>
      %cst_15 = arith.constant 0.000000e+00 : f32
      %17 = vector.broadcast %cst_15 : f32 to vector<2x512xf32>
      %18 = arith.maximumf %16, %17 : vector<2x512xf32>
      %c0_16 = arith.constant 0 : index
      %c0_17 = arith.constant 0 : index
      %19 = vector.load %arg5[%c0_16, %c0_17] : memref<512x128xf32, #tpu.memory_space<vmem>>, vector<512x128xf32>
      %cst_18 = arith.constant dense<0.000000e+00> : vector<2x128xf32>
      %20 = tpu.matmul %18, %19, %cst_18 {dimension_numbers = #tpu.dot_dimension_numbers<[1], [0], [0], [1], [0, 0, 1, 1], [], []>} : vector<2x512xf32>, vector<512x128xf32>, vector<2x128xf32> -> vector<2x128xf32>
      %c0_19 = arith.constant 0 : index
      %c0_20 = arith.constant 0 : index
      %21 = vector.load %arg6[%c0_19, %c0_20] : memref<1x128xf32, #tpu.memory_space<vmem>>, vector<1x128xf32>
      %22 = vector.broadcast %21 : vector<1x128xf32> to vector<2x128xf32>
      %23 = arith.addf %20, %22 : vector<2x128xf32>
      %c0_21 = arith.constant 0 : index
      %c0_22 = arith.constant 0 : index
      %24 = vector.load %arg7[%c0_21, %c0_22] : memref<2x128xf32, #tpu.memory_space<vmem>>, vector<2x128xf32>
      tpu.vector_store %arg7[%c0_21, %c0_22], %23 {strides = array<i32>} : memref<2x128xf32, #tpu.memory_space<vmem>>, vector<2x128xf32>,
    } else {
    }
    return
  }
  func.func @transform_0(%arg0: i32, %arg1: i32) -> (i32, i32, i32) {
    %c0_i32 = arith.constant 0 : i32
    %c0_i32_0 = arith.constant 0 : i32
    return %arg0, %arg1, %c0_i32 : i32, i32, i32
  }
  func.func @transform_1(%arg0: i32, %arg1: i32) -> (i32, i32) {
    %c0_i32 = arith.constant 0 : i32
    %c0_i32_0 = arith.constant 0 : i32
    return %arg1, %c0_i32 : i32, i32
  }
  func.func @transform_2(%arg0: i32, %arg1: i32) -> (i32, i32) {
    %c0_i32 = arith.constant 0 : i32
    %c0_i32_0 = arith.constant 0 : i32
    %c0_i32_1 = arith.constant 0 : i32
    return %c0_i32, %c0_i32_0 : i32, i32
  }
  func.func @transform_3(%arg0: i32, %arg1: i32) -> (i32, i32) {
    %c0_i32 = arith.constant 0 : i32
    %c0_i32_0 = arith.constant 0 : i32
    %c0_i32_1 = arith.constant 0 : i32
    return %c0_i32, %c0_i32_0 : i32, i32
  }
  func.func @transform_4(%arg0: i32, %arg1: i32) -> (i32, i32) {
    %c0_i32 = arith.constant 0 : i32
    %c0_i32_0 = arith.constant 0 : i32
    %c0_i32_1 = arith.constant 0 : i32
    return %c0_i32, %c0_i32_0 : i32, i32
  }
  func.func @transform_5(%arg0: i32, %arg1: i32) -> (i32, i32) {
    %c0_i32 = arith.constant 0 : i32
    %c0_i32_0 = arith.constant 0 : i32
    return %arg0, %c0_i32 : i32, i32
  }
}

</mosaic_0001>

<llo_original>
// kernel: tpu_custom_call.1
$region0: #{tpu_custom_call.1}
  #allocation0 [shape = 'u32[]', space=smem, size = 0x4, offset = 0x4, fixed_abs, tag = 'smem constant byte address 0x4 - core index']
  #allocation1 [shape = 'u32[72,128]{1,0:T(1,128)}', space=vmem, size = 0x9000, scoped, tag = 'internal scratch']
  #allocation2 [shape = 'f32[2,512]{1,0:T(2,128)}', space=vmem, size = 0x1000, scoped, tag = 'scratch operand']
  %s0 = inlined_call_operand.vmem [shape: f32[2,512,16], index: 0, kind: input, shape index: {}]
  %s1 = inlined_call_operand.hbm [shape: f32[512,512], index: 1, kind: input, shape index: {}]
  %s2 = inlined_call_operand.vmem [shape: f32[1,512], index: 2, kind: input, shape index: {}]
  %s3 = inlined_call_operand.vmem [shape: f32[512,128], index: 3, kind: input, shape index: {}]
  %s4 = inlined_call_operand.vmem [shape: f32[1,128], index: 4, kind: input, shape index: {}]
  %s5 = inlined_call_operand.hbm [shape: f32[2,128], index: 5, kind: output, shape index: {}]
  %s6 = sld [smem:[#allocation0]]
  $region103: #{tpu_custom_call.1} parent=0
    _
  %s8 = ssub.s32 1, %s6
  %s9 = scalar_select 0, %s8, %s6
  $region1: #{tpu_custom_call.1} parent=0
    #allocation3 [shape = 'u8[262144]{0}', space=vmem, size = 0x40000, scoped, tag = 'input window, operand 0']
    #allocation4 [shape = 'u8[524288]{0}', space=vmem, size = 0x80000, scoped, tag = 'input window, operand 1']
    #allocation5 [shape = 's32[2]{0}', space=sflag, size = 0x8, scoped, tag = 'scoped memory for tpu_custom_call.1']
    #allocation6 [shape = 's32[2]{0}', space=sflag, size = 0x8, scoped, tag = 'scoped memory for tpu_custom_call.1']
    #allocation7 [shape = 'u8[1024]{0}', space=vmem, size = 0x400, scoped, tag = 'output window, operand 0, single buffered']
    %10 = vsyncpa [#allocation5], 0
    %s11 = scalar_lea.sflag [#allocation5], 1
    %12 = vsyncpa %s11, 0
    %13 = vsyncpa [#allocation6], 0
    loop: start=0, step=1, limit=6
    $region2: #{tpu_custom_call.1} parent=1 // loop_pre_header
      _
    $region3: #{tpu_custom_call.1} parent=1 // loop_header
      %s15 = sphi 0, %s19
      %p16 = scmp.ge.s32.totalorder %s15, 6
      %s22 = sphi 0, %s34
      %s23 = sphi 0, %s30
      %s24 = sphi 0, %s22
      %s25 = sphi 0, %s23
      %s26 = sphi 0, %s24
      %s27 = sphi 0, %s25
      %s39 = sphi 0, %s41
      %s42 = sphi 0, %s39
      %s43 = sphi 0, %s42
      %s59 = sphi 0, %s43
      %s65 = sphi 0, %s67
      %s68 = sphi 0, %s65
      %s69 = sphi 0, %s68
      %s85 = sphi 0, %s69
      %s89 = sphi 0, %s89
      %s91 = sphi 0, %s89
      %s92 = sphi 0, %s91
      %s106 = sphi 0, %s92
      %s110 = sphi 0, %s110
      %s112 = sphi 0, %s110
      %s113 = sphi 0, %s112
      %s127 = sphi 0, %s113
      %s131 = sphi 0, %s131
      %s133 = sphi 0, %s131
      %s134 = sphi 0, %s133
      %s148 = sphi 0, %s134
      %s154 = sphi 0, %s156
      %s157 = sphi 0, %s154
      %s158 = sphi 0, %s157
      %s174 = sphi 0, %s158
    $region4: #{tpu_custom_call.1} parent=1 // loop_header_branch
      %18 = sbr.rel (%p16) target = $region8
    $region5: #{tpu_custom_call.1} parent=1 // loop_body
      %s20 = ssub.s32 %s15, 1
      %s21 = ssub.s32 %s15, 2
      %s28 = sadd.s32 1, %s23
      %p29 = scmp.ge.s32.totalorder %s28, 4
      %s30 = scalar_select %p29, 0, %s28
      %s31 = sadd.s32 1, %s22
      %s32 = scalar_select %p29, %s31, %s22
      %p33 = scmp.ge.s32.totalorder %s32, 1
      %s34 = scalar_select %p33, 0, %s32
      %s35 = ssub.s32 %s22, %s34
      %s36 = ssub.s32 %s23, %s30
      %s37 = sor.u32 %s35, %s36
      %p38 = scmp.eq.s32.totalorder %s37, 0
      %s40 = sadd.s32 %s39, 1
      %s41 = scalar_select %p38, %s39, %s40
      %p44 = pneg %p38
      %p45 = scmp.eq.s32.totalorder %s15, 3
      %p46 = por %p44, %p45
      %p47 = scmp.ne.s32.totalorder %s39, %s42
      %p48 = scmp.eq.s32.totalorder %s15, 0
      %p49 = por %p47, %p48
      %p50 = scmp.ne.s32.totalorder %s39, %s42
      %p51 = scmp.eq.s32.totalorder %s20, 3
      %p52 = por %p50, %p51
      %p53 = scmp.ne.s32.totalorder %s42, %s43
      %p54 = scmp.eq.s32.totalorder %s20, 0
      %p55 = por %p53, %p54
      %p56 = scmp.ne.s32.totalorder %s42, %s43
      %p57 = scmp.eq.s32.totalorder %s21, 3
      %p58 = por %p56, %p57
      %p60 = scmp.ne.s32.totalorder %s43, %s59
      %p61 = scmp.eq.s32.totalorder %s21, 0
      %p62 = por %p60, %p61
      %s63 = ssub.s32 %s23, %s30
      %p64 = scmp.eq.s32.totalorder %s63, 0
      %s66 = sadd.s32 %s65, 1
      %s67 = scalar_select %p64, %s65, %s66
      %p70 = pneg %p64
      %p71 = scmp.eq.s32.totalorder %s15, 3
      %p72 = por %p70, %p71
      %p73 = scmp.ne.s32.totalorder %s65, %s68
      %p74 = scmp.eq.s32.totalorder %s15, 0
      %p75 = por %p73, %p74
      %p76 = scmp.ne.s32.totalorder %s65, %s68
      %p77 = scmp.eq.s32.totalorder %s20, 3
      %p78 = por %p76, %p77
      %p79 = scmp.ne.s32.totalorder %s68, %s69
      %p80 = scmp.eq.s32.totalorder %s20, 0
      %p81 = por %p79, %p80
      %p82 = scmp.ne.s32.totalorder %s68, %s69
      %p83 = scmp.eq.s32.totalorder %s21, 3
      %p84 = por %p82, %p83
      %p86 = scmp.ne.s32.totalorder %s69, %s85
      %p87 = scmp.eq.s32.totalorder %s21, 0
      %p88 = por %p86, %p87
      %s90 = sadd.s32 %s89, 1
      %p93 = scmp.eq.s32.totalorder %s15, 3
      %p94 = scmp.ne.s32.totalorder %s89, %s91
      %p95 = scmp.eq.s32.totalorder %s15, 0
      %p96 = por %p94, %p95
      %p97 = scmp.ne.s32.totalorder %s89, %s91
      %p98 = scmp.eq.s32.totalorder %s20, 3
      %p99 = por %p97, %p98
      %p100 = scmp.ne.s32.totalorder %s91, %s92
      %p101 = scmp.eq.s32.totalorder %s20, 0
      %p102 = por %p100, %p101
      %p103 = scmp.ne.s32.totalorder %s91, %s92
      %p104 = scmp.eq.s32.totalorder %s21, 3
      %p105 = por %p103, %p104
      %p107 = scmp.ne.s32.totalorder %s92, %s106
      %p108 = scmp.eq.s32.totalorder %s21, 0
      %p109 = por %p107, %p108
      %s111 = sadd.s32 %s110, 1
      %p114 = scmp.eq.s32.totalorder %s15, 3
      %p115 = scmp.ne.s32.totalorder %s110, %s112
      %p116 = scmp.eq.s32.totalorder %s15, 0
      %p117 = por %p115, %p116
      %p118 = scmp.ne.s32.totalorder %s110, %s112
      %p119 = scmp.eq.s32.totalorder %s20, 3
      %p120 = por %p118, %p119
      %p121 = scmp.ne.s32.totalorder %s112, %s113
      %p122 = scmp.eq.s32.totalorder %s20, 0
      %p123 = por %p121, %p122
      %p124 = scmp.ne.s32.totalorder %s112, %s113
      %p125 = scmp.eq.s32.totalorder %s21, 3
      %p126 = por %p124, %p125
      %p128 = scmp.ne.s32.totalorder %s113, %s127
      %p129 = scmp.eq.s32.totalorder %s21, 0
      %p130 = por %p128, %p129
      %s132 = sadd.s32 %s131, 1
      %p135 = scmp.eq.s32.totalorder %s15, 3
      %p136 = scmp.ne.s32.totalorder %s131, %s133
      %p137 = scmp.eq.s32.totalorder %s15, 0
      %p138 = por %p136, %p137
      %p139 = scmp.ne.s32.totalorder %s131, %s133
      %p140 = scmp.eq.s32.totalorder %s20, 3
      %p141 = por %p139, %p140
      %p142 = scmp.ne.s32.totalorder %s133, %s134
      %p143 = scmp.eq.s32.totalorder %s20, 0
      %p144 = por %p142, %p143
      %p145 = scmp.ne.s32.totalorder %s133, %s134
      %p146 = scmp.eq.s32.totalorder %s21, 3
      %p147 = por %p145, %p146
      %p149 = scmp.ne.s32.totalorder %s134, %s148
      %p150 = scmp.eq.s32.totalorder %s21, 0
      %p151 = por %p149, %p150
      %s152 = ssub.s32 %s22, %s34
      %p153 = scmp.eq.s32.totalorder %s152, 0
      %s155 = sadd.s32 %s154, 1
      %s156 = scalar_select %p153, %s154, %s155
      %p159 = pneg %p153
      %p160 = scmp.eq.s32.totalorder %s15, 3
      %p161 = por %p159, %p160
      %p162 = scmp.ne.s32.totalorder %s154, %s157
      %p163 = scmp.eq.s32.totalorder %s15, 0
      %p164 = por %p162, %p163
      %p165 = scmp.ne.s32.totalorder %s154, %s157
      %p166 = scmp.eq.s32.totalorder %s20, 3
      %p167 = por %p165, %p166
      %p168 = scmp.ne.s32.totalorder %s157, %s158
      %p169 = scmp.eq.s32.totalorder %s20, 0
      %p170 = por %p168, %p169
      %p171 = scmp.ne.s32.totalorder %s157, %s158
      %p172 = scmp.eq.s32.totalorder %s21, 3
      %p173 = por %p171, %p172
      %p175 = scmp.ne.s32.totalorder %s158, %s174
      %p176 = scmp.eq.s32.totalorder %s21, 0
      %p177 = por %p175, %p176
      %p178 = scmp.le.s32.totalorder 1, %s15
      %p179 = scmp.lt.s32.totalorder %s15, 5
      %p180 = pnand %p178, %p179
      %p181 = pneg %p180
      // Predicated region
      $region9: #{tpu_custom_call.1} parent=5 // pred_check
        _
      $region10: #{tpu_custom_call.1} parent=5 // pred_check_branch
        %183 = sbr.rel (%p180) target = $region12
      $region11: #{tpu_custom_call.1} parent=5 // pred_region
        %s184 = ssub.s32 %s15, 1
        // Predicated region
        $region13: #{tpu_custom_call.1} parent=11 // pred_check
          %p185 = pneg %p102
        $region14: #{tpu_custom_call.1} parent=11 // pred_check_branch
          %187 = sbr.rel (%p185) target = $region16
        $region15: #{tpu_custom_call.1} parent=11 // pred_region
          _
        $region16: #{tpu_custom_call.1} parent=11 // pred_fallthru
          _
        // Predicated region
        $region17: #{tpu_custom_call.1} parent=11 // pred_check
          %p188 = pneg %p123
        $region18: #{tpu_custom_call.1} parent=11 // pred_check_branch
          %190 = sbr.rel (%p188) target = $region20
        $region19: #{tpu_custom_call.1} parent=11 // pred_region
          _
        $region20: #{tpu_custom_call.1} parent=11 // pred_fallthru
          _
        // Predicated region
        $region21: #{tpu_custom_call.1} parent=11 // pred_check
          %p191 = pneg %p144
        $region22: #{tpu_custom_call.1} parent=11 // pred_check_branch
          %193 = sbr.rel (%p191) target = $region24
        $region23: #{tpu_custom_call.1} parent=11 // pred_region
          _
        $region24: #{tpu_custom_call.1} parent=11 // pred_fallthru
          _
      $region12: #{tpu_custom_call.1} parent=5 // pred_fallthru
        _
      %p194 = scmp.lt.s32.totalorder %s15, 4
      // Predicated region
      $region25: #{tpu_custom_call.1} parent=5 // pred_check
        %p195 = pneg %p194
      $region26: #{tpu_custom_call.1} parent=5 // pred_check_branch
        %197 = sbr.rel (%p195) target = $region28
      $region27: #{tpu_custom_call.1} parent=5 // pred_region
        // Predicated region
        $region29: #{tpu_custom_call.1} parent=27 // pred_check
          %p198 = pneg %p49
        $region30: #{tpu_custom_call.1} parent=27 // pred_check_branch
          %200 = sbr.rel (%p198) target = $region32
        $region31: #{tpu_custom_call.1} parent=27 // pred_region
          %s201 = sand.u32 %s39, 1
          %s202 = sand.u32 %s39, 1
          %s203 = smul.addr %s202, 256
          %s204 = scalar_lea.vmem [#allocation3], %s203
          %s205 = smul.u32 2, %s22
          %s206 = smul.u32 16, %s23
          %s207 = smul.addr %s205, 64
          %s208 = sadd.s32 %s206, %s207
          %s209 = smul.addr %s208, 8
          %s210 = scalar_lea.vmem %s0, %s209
          // Predicated region
          $region33: #{tpu_custom_call.1} parent=31 // pred_check
            _
          $region34: #{tpu_custom_call.1} parent=31 // pred_check_branch
            %212 = sbr.rel (0) target = $region36
          $region35: #{tpu_custom_call.1} parent=31 // pred_region
            // Predicated region
            $region37: #{tpu_custom_call.1} parent=35 // pred_check
              _
            $region38: #{tpu_custom_call.1} parent=35 // pred_check_branch
              %214 = sbr.rel (0) target = $region40
            $region39: #{tpu_custom_call.1} parent=35 // pred_region
              // Predicated region
              $region52: #{tpu_custom_call.1} parent=39 // pred_check
                _
              $region53: #{tpu_custom_call.1} parent=39 // pred_check_branch
                %292 = sbr.rel (0) target = $region55
              $region54: #{tpu_custom_call.1} parent=39 // pred_region
                loop: start=0, step=1, limit=1
                $region56: #{tpu_custom_call.1} parent=54 // loop_pre_header
                  _
                $region57: #{tpu_custom_call.1} parent=54 // loop_header
                  %s294 = sphi 0, %s298
                  %p295 = scmp.ge.s32.totalorder %s294, 1
                  %s299 = sphi %s210, %s210
                  %s300 = sphi %s204, %s204
                $region58: #{tpu_custom_call.1} parent=54 // loop_header_branch
                  %297 = sbr.rel (%p295) target = $region62
                $region59: #{tpu_custom_call.1} parent=54 // loop_body
                  %v301 = vld [vmem:[%s299] sm:$0xff]
                  %302 = vst [vmem:[%s300] sm:$0xff] %v301
                  %v303 = vld [vmem:[%s299 + $0x8] sm:$0xff]
                  %304 = vst [vmem:[%s300 + $0x8] sm:$0xff] %v303
                  %v305 = vld [vmem:[%s299 + $0x10] sm:$0xff]
                  %306 = vst [vmem:[%s300 + $0x10] sm:$0xff] %v305
                  %v307 = vld [vmem:[%s299 + $0x18] sm:$0xff]
                  %308 = vst [vmem:[%s300 + $0x18] sm:$0xff] %v307
                  %v309 = vld [vmem:[%s299 + $0x20] sm:$0xff]
                  %310 = vst [vmem:[%s300 + $0x20] sm:$0xff] %v309
                  %v311 = vld [vmem:[%s299 + $0x28] sm:$0xff]
                  %312 = vst [vmem:[%s300 + $0x28] sm:$0xff] %v311
                  %v313 = vld [vmem:[%s299 + $0x30] sm:$0xff]
                  %314 = vst [vmem:[%s300 + $0x30] sm:$0xff] %v313
                  %v315 = vld [vmem:[%s299 + $0x38] sm:$0xff]
                  %316 = vst [vmem:[%s300 + $0x38] sm:$0xff] %v315
                  %v317 = vld [vmem:[%s299 + $0x40] sm:$0xff]
                  %318 = vst [vmem:[%s300 + $0x40] sm:$0xff] %v317
                  %v319 = vld [vmem:[%s299 + $0x48] sm:$0xff]
                  %320 = vst [vmem:[%s300 + $0x48] sm:$0xff] %v319
                  %v321 = vld [vmem:[%s299 + $0x50] sm:$0xff]
                  %322 = vst [vmem:[%s300 + $0x50] sm:$0xff] %v321
                  %v323 = vld [vmem:[%s299 + $0x58] sm:$0xff]
                  %324 = vst [vmem:[%s300 + $0x58] sm:$0xff] %v323
                  %v325 = vld [vmem:[%s299 + $0x60] sm:$0xff]
                  %326 = vst [vmem:[%s300 + $0x60] sm:$0xff] %v325
                  %v327 = vld [vmem:[%s299 + $0x68] sm:$0xff]
                  %328 = vst [vmem:[%s300 + $0x68] sm:$0xff] %v327
                  %v329 = vld [vmem:[%s299 + $0x70] sm:$0xff]
                  %330 = vst [vmem:[%s300 + $0x70] sm:$0xff] %v329
                  %v331 = vld [vmem:[%s299 + $0x78] sm:$0xff]
                  %332 = vst [vmem:[%s300 + $0x78] sm:$0xff] %v331
                  %v333 = vld [vmem:[%s299 + $0x200] sm:$0xff]
                  %334 = vst [vmem:[%s300 + $0x80] sm:$0xff] %v333
                  %v335 = vld [vmem:[%s299 + $0x208] sm:$0xff]
                  %336 = vst [vmem:[%s300 + $0x88] sm:$0xff] %v335
                  %v337 = vld [vmem:[%s299 + $0x210] sm:$0xff]
                  %338 = vst [vmem:[%s300 + $0x90] sm:$0xff] %v337
                  %v339 = vld [vmem:[%s299 + $0x218] sm:$0xff]
                  %340 = vst [vmem:[%s300 + $0x98] sm:$0xff] %v339
                  %v341 = vld [vmem:[%s299 + $0x220] sm:$0xff]
                  %342 = vst [vmem:[%s300 + $0xa0] sm:$0xff] %v341
                  %v343 = vld [vmem:[%s299 + $0x228] sm:$0xff]
                  %344 = vst [vmem:[%s300 + $0xa8] sm:$0xff] %v343
                  %v345 = vld [vmem:[%s299 + $0x230] sm:$0xff]
                  %346 = vst [vmem:[%s300 + $0xb0] sm:$0xff] %v345
                  %v347 = vld [vmem:[%s299 + $0x238] sm:$0xff]
                  %348 = vst [vmem:[%s300 + $0xb8] sm:$0xff] %v347
                  %v349 = vld [vmem:[%s299 + $0x240] sm:$0xff]
                  %350 = vst [vmem:[%s300 + $0xc0] sm:$0xff] %v349
                  %v351 = vld [vmem:[%s299 + $0x248] sm:$0xff]
                  %352 = vst [vmem:[%s300 + $0xc8] sm:$0xff] %v351
                  %v353 = vld [vmem:[%s299 + $0x250] sm:$0xff]
                  %354 = vst [vmem:[%s300 + $0xd0] sm:$0xff] %v353
                  %v355 = vld [vmem:[%s299 + $0x258] sm:$0xff]
                  %356 = vst [vmem:[%s300 + $0xd8] sm:$0xff] %v355
                  %v357 = vld [vmem:[%s299 + $0x260] sm:$0xff]
                  %358 = vst [vmem:[%s300 + $0xe0] sm:$0xff] %v357
                  %v359 = vld [vmem:[%s299 + $0x268] sm:$0xff]
                  %360 = vst [vmem:[%s300 + $0xe8] sm:$0xff] %v359
                  %v361 = vld [vmem:[%s299 + $0x270] sm:$0xff]
                  %362 = vst [vmem:[%s300 + $0xf0] sm:$0xff] %v361
                  %v363 = vld [vmem:[%s299 + $0x278] sm:$0xff]
                  %364 = vst [vmem:[%s300 + $0xf8] sm:$0xff] %v363
                $region60: #{tpu_custom_call.1} parent=54 // loop_footer
                  %s298 = sadd.s32 1, %s294
                $region61: #{tpu_custom_call.1} parent=54 // loop_footer_branch
                  %293 = sbr.rel target = $region57
                $region62: #{tpu_custom_call.1} parent=54 // loop_exit
                  _
              $region55: #{tpu_custom_call.1} parent=39 // pred_fallthru
                _
              // Predicated region
              $region63: #{tpu_custom_call.1} parent=39 // pred_check
                _
              $region64: #{tpu_custom_call.1} parent=39 // pred_check_branch
                %366 = sbr.rel target = $region66
              $region65: #{tpu_custom_call.1} parent=39 // pred_region
                _
              $region66: #{tpu_custom_call.1} parent=39 // pred_fallthru
                _
            $region40: #{tpu_custom_call.1} parent=35 // pred_fallthru
              _
            // Predicated region
            $region41: #{tpu_custom_call.1} parent=35 // pred_check
              _
            $region42: #{tpu_custom_call.1} parent=35 // pred_check_branch
              %216 = sbr.rel target = $region44
            $region43: #{tpu_custom_call.1} parent=35 // pred_region
              %s218 = ssub.s32 256, 1
              loop: start=0, step=1, limit=1
              $region45: #{tpu_custom_call.1} parent=43 // loop_pre_header
                _
              $region46: #{tpu_custom_call.1} parent=43 // loop_header
                %s220 = sphi 0, %s224
                %p221 = scmp.ge.s32.totalorder %s220, 1
                %s225 = sphi %s210, %s210
                %s226 = sphi %s204, %s204
              $region47: #{tpu_custom_call.1} parent=43 // loop_header_branch
                %223 = sbr.rel (%p221) target = $region51
              $region48: #{tpu_custom_call.1} parent=43 // loop_body
                %v227 = vld [vmem:[%s225] sm:%s218]
                %228 = vst [vmem:[%s226] sm:%s218] %v227
                %v229 = vld [vmem:[%s225 + $0x8] sm:%s218]
                %230 = vst [vmem:[%s226 + $0x8] sm:%s218] %v229
                %v231 = vld [vmem:[%s225 + $0x10] sm:%s218]
                %232 = vst [vmem:[%s226 + $0x10] sm:%s218] %v231
                %v233 = vld [vmem:[%s225 + $0x18] sm:%s218]
                %234 = vst [vmem:[%s226 + $0x18] sm:%s218] %v233
                %v235 = vld [vmem:[%s225 + $0x20] sm:%s218]
                %236 = vst [vmem:[%s226 + $0x20] sm:%s218] %v235
                %v237 = vld [vmem:[%s225 + $0x28] sm:%s218]
                %238 = vst [vmem:[%s226 + $0x28] sm:%s218] %v237
                %v239 = vld [vmem:[%s225 + $0x30] sm:%s218]
                %240 = vst [vmem:[%s226 + $0x30] sm:%s218] %v239
                %v241 = vld [vmem:[%s225 + $0x38] sm:%s218]
                %242 = vst [vmem:[%s226 + $0x38] sm:%s218] %v241
                %v243 = vld [vmem:[%s225 + $0x40] sm:%s218]
                %244 = vst [vmem:[%s226 + $0x40] sm:%s218] %v243
                %v245 = vld [vmem:[%s225 + $0x48] sm:%s218]
                %246 = vst [vmem:[%s226 + $0x48] sm:%s218] %v245
                %v247 = vld [vmem:[%s225 + $0x50] sm:%s218]
                %248 = vst [vmem:[%s226 + $0x50] sm:%s218] %v247
                %v249 = vld [vmem:[%s225 + $0x58] sm:%s218]
                %250 = vst [vmem:[%s226 + $0x58] sm:%s218] %v249
                %v251 = vld [vmem:[%s225 + $0x60] sm:%s218]
                %252 = vst [vmem:[%s226 + $0x60] sm:%s218] %v251
                %v253 = vld [vmem:[%s225 + $0x68] sm:%s218]
                %254 = vst [vmem:[%s226 + $0x68] sm:%s218] %v253
                %v255 = vld [vmem:[%s225 + $0x70] sm:%s218]
                %256 = vst [vmem:[%s226 + $0x70] sm:%s218] %v255
                %v257 = vld [vmem:[%s225 + $0x78] sm:%s218]
                %258 = vst [vmem:[%s226 + $0x78] sm:%s218] %v257
                %v259 = vld [vmem:[%s225 + $0x200] sm:%s218]
                %260 = vst [vmem:[%s226 + $0x80] sm:%s218] %v259
                %v261 = vld [vmem:[%s225 + $0x208] sm:%s218]
                %262 = vst [vmem:[%s226 + $0x88] sm:%s218] %v261
                %v263 = vld [vmem:[%s225 + $0x210] sm:%s218]
                %264 = vst [vmem:[%s226 + $0x90] sm:%s218] %v263
                %v265 = vld [vmem:[%s225 + $0x218] sm:%s218]
                %266 = vst [vmem:[%s226 + $0x98] sm:%s218] %v265
                %v267 = vld [vmem:[%s225 + $0x220] sm:%s218]
                %268 = vst [vmem:[%s226 + $0xa0] sm:%s218] %v267
                %v269 = vld [vmem:[%s225 + $0x228] sm:%s218]
                %270 = vst [vmem:[%s226 + $0xa8] sm:%s218] %v269
                %v271 = vld [vmem:[%s225 + $0x230] sm:%s218]
                %272 = vst [vmem:[%s226 + $0xb0] sm:%s218] %v271
                %v273 = vld [vmem:[%s225 + $0x238] sm:%s218]
                %274 = vst [vmem:[%s226 + $0xb8] sm:%s218] %v273
                %v275 = vld [vmem:[%s225 + $0x240] sm:%s218]
                %276 = vst [vmem:[%s226 + $0xc0] sm:%s218] %v275
                %v277 = vld [vmem:[%s225 + $0x248] sm:%s218]
                %278 = vst [vmem:[%s226 + $0xc8] sm:%s218] %v277
                %v279 = vld [vmem:[%s225 + $0x250] sm:%s218]
                %280 = vst [vmem:[%s226 + $0xd0] sm:%s218] %v279
                %v281 = vld [vmem:[%s225 + $0x258] sm:%s218]
                %282 = vst [vmem:[%s226 + $0xd8] sm:%s218] %v281
                %v283 = vld [vmem:[%s225 + $0x260] sm:%s218]
                %284 = vst [vmem:[%s226 + $0xe0] sm:%s218] %v283
                %v285 = vld [vmem:[%s225 + $0x268] sm:%s218]
                %286 = vst [vmem:[%s226 + $0xe8] sm:%s218] %v285
                %v287 = vld [vmem:[%s225 + $0x270] sm:%s218]
                %288 = vst [vmem:[%s226 + $0xf0] sm:%s218] %v287
                %v289 = vld [vmem:[%s225 + $0x278] sm:%s218]
                %290 = vst [vmem:[%s226 + $0xf8] sm:%s218] %v289
              $region49: #{tpu_custom_call.1} parent=43 // loop_footer
                %s224 = sadd.s32 1, %s220
              $region50: #{tpu_custom_call.1} parent=43 // loop_footer_branch
                %219 = sbr.rel target = $region46
              $region51: #{tpu_custom_call.1} parent=43 // loop_exit
                _
            $region44: #{tpu_custom_call.1} parent=35 // pred_fallthru
              _
          $region36: #{tpu_custom_call.1} parent=31 // pred_fallthru
            _
          %367 = vnop
        $region32: #{tpu_custom_call.1} parent=27 // pred_fallthru
          _
        // Predicated region
        $region67: #{tpu_custom_call.1} parent=27 // pred_check
          %p368 = pneg %p75
        $region68: #{tpu_custom_call.1} parent=27 // pred_check_branch
          %370 = sbr.rel (%p368) target = $region70
        $region69: #{tpu_custom_call.1} parent=27 // pred_region
          %s371 = sand.u32 %s65, 1
          %s372 = scalar_lea.sflag [#allocation5], %s371
          %s373 = sand.u32 %s65, 1
          %s374 = smul.addr %s373, 512
          %s375 = scalar_lea.vmem [#allocation4], %s374
          %s376 = smul.u32 16, %s23
          %378 = vsyncadd %s372, 0
          %s379 = smul.addr %s376, 4
          %s380 = smul.addr %s379, 8
          %s381 = scalar_lea.hbm %s1, %s380
          %s382 = sshll.u32 %s381, 4
          %s383 = int_to_ptr.hbm [resolvable:$true] %s382
          %s384 = sshll.u32 %s375, 4
          %s385 = int_to_ptr.vmem [resolvable:$true] %s384
          %390 = dma.hbm_to_vmem [thread:$0]  %s383, 8192, %s385, %s372, 512, 512, 32
        $region70: #{tpu_custom_call.1} parent=27 // pred_fallthru
          _
      $region28: #{tpu_custom_call.1} parent=5 // pred_fallthru
        _
      %p391 = scmp.le.s32.totalorder 1, %s15
      %p392 = scmp.lt.s32.totalorder %s15, 5
      %p393 = pnand %p391, %p392
      %p394 = pneg %p393
      // Predicated region
      $region71: #{tpu_custom_call.1} parent=5 // pred_check
        _
      $region72: #{tpu_custom_call.1} parent=5 // pred_check_branch
        %396 = sbr.rel (%p393) target = $region74
      $region73: #{tpu_custom_call.1} parent=5 // pred_region
        %s397 = ssub.s32 %s15, 1
        %s398 = sand.u32 %s42, 1
        %s399 = sand.u32 %s42, 1
        %s400 = smul.addr %s399, 256
        %s401 = scalar_lea.vmem [#allocation3], %s400
        // Predicated region
        $region75: #{tpu_custom_call.1} parent=73 // pred_check
          %p402 = pneg %p55
        $region76: #{tpu_custom_call.1} parent=73 // pred_check_branch
          %404 = sbr.rel (%p402) target = $region78
        $region77: #{tpu_custom_call.1} parent=73 // pred_region
          _
        $region78: #{tpu_custom_call.1} parent=73 // pred_fallthru
          _
        %s405 = sand.u32 %s68, 1
        %s406 = scalar_lea.sflag [#allocation5], %s405
        %s407 = sand.u32 %s68, 1
        %s408 = smul.addr %s407, 512
        %s409 = scalar_lea.vmem [#allocation4], %s408
        // Predicated region
        $region79: #{tpu_custom_call.1} parent=73 // pred_check
          %p410 = pneg %p81
        $region80: #{tpu_custom_call.1} parent=73 // pred_check_branch
          %412 = sbr.rel (%p410) target = $region82
        $region81: #{tpu_custom_call.1} parent=73 // pred_region
          %414 = dma.done %s406, 8192
        $region82: #{tpu_custom_call.1} parent=73 // pred_fallthru
          _
        %s415 = sand.u32 %s42, 1
        %s416 = sand.u32 %s42, 1
        %s417 = smul.addr %s416, 256
        %s418 = scalar_lea.vmem [#allocation3], %s417
        %p419 = pneg %p55
        %p420 = pneg %p52
        %s421 = sand.u32 %s68, 1
        %s422 = scalar_lea.sflag [#allocation5], %s421
        %s423 = sand.u32 %s68, 1
        %s424 = smul.addr %s423, 512
        %s425 = scalar_lea.vmem [#allocation4], %s424
        %p426 = pneg %p81
        %p427 = pneg %p78
        %p428 = pneg %p102
        %p429 = pneg %p99
        %p430 = pneg %p123
        %p431 = pneg %p120
        %p432 = pneg %p144
        %p433 = pneg %p141
        %p434 = pneg %p170
        %p435 = pneg %p167
        %s436 = smul.u32 2, %s24
        %s437 = smul.u32 16, %s25
        %s438 = smul.u32 16, %s25
        %p439 = scmp.eq.s32.totalorder %s25, 0
        // Predicated region
        $region83: #{tpu_custom_call.1} parent=73 // pred_check
          %p440 = pneg %p439
        $region84: #{tpu_custom_call.1} parent=73 // pred_check_branch
          %442 = sbr.rel (%p440) target = $region86
        $region85: #{tpu_custom_call.1} parent=73 // pred_region
          %443 = vst [vmem:[#allocation2] sm:$0xff] 0.0
        $region86: #{tpu_custom_call.1} parent=73 // pred_fallthru
          _
        %v444 = vld [vmem:[%s401] sm:$0xff]
        %v445 = vld [vmem:[%s401 + $0x8] sm:$0xff]
        %v446 = vld [vmem:[%s401 + $0x10] sm:$0xff]
        %v447 = vld [vmem:[%s401 + $0x18] sm:$0xff]
        %v448 = vld [vmem:[%s401 + $0x20] sm:$0xff]
        %v449 = vld [vmem:[%s401 + $0x28] sm:$0xff]
        %v450 = vld [vmem:[%s401 + $0x30] sm:$0xff]
        %v451 = vld [vmem:[%s401 + $0x38] sm:$0xff]
        %v452 = vld [vmem:[%s401 + $0x40] sm:$0xff]
        %v453 = vld [vmem:[%s401 + $0x48] sm:$0xff]
        %v454 = vld [vmem:[%s401 + $0x50] sm:$0xff]
        %v455 = vld [vmem:[%s401 + $0x58] sm:$0xff]
        %v456 = vld [vmem:[%s401 + $0x60] sm:$0xff]
        %v457 = vld [vmem:[%s401 + $0x68] sm:$0xff]
        %v458 = vld [vmem:[%s401 + $0x70] sm:$0xff]
        %v459 = vld [vmem:[%s401 + $0x78] sm:$0xff]
        %v460 = vld [vmem:[%s401 + $0x80] sm:$0xff]
        %v461 = vld [vmem:[%s401 + $0x88] sm:$0xff]
        %v462 = vld [vmem:[%s401 + $0x90] sm:$0xff]
        %v463 = vld [vmem:[%s401 + $0x98] sm:$0xff]
        %v464 = vld [vmem:[%s401 + $0xa0] sm:$0xff]
        %v465 = vld [vmem:[%s401 + $0xa8] sm:$0xff]
        %v466 = vld [vmem:[%s401 + $0xb0] sm:$0xff]
        %v467 = vld [vmem:[%s401 + $0xb8] sm:$0xff]
        %v468 = vld [vmem:[%s401 + $0xc0] sm:$0xff]
        %v469 = vld [vmem:[%s401 + $0xc8] sm:$0xff]
        %v470 = vld [vmem:[%s401 + $0xd0] sm:$0xff]
        %v471 = vld [vmem:[%s401 + $0xd8] sm:$0xff]
        %v472 = vld [vmem:[%s401 + $0xe0] sm:$0xff]
        %v473 = vld [vmem:[%s401 + $0xe8] sm:$0xff]
        %v474 = vld [vmem:[%s401 + $0xf0] sm:$0xff]
        %v475 = vld [vmem:[%s401 + $0xf8] sm:$0xff]
        %vm476 = vcmask 130048
        %v477 = vsel %vm476, %v444, 0.0
        %478 = vadd.xlane.f32.xlu0 %v477
        %v479 = vpop.xlane.xlu0 %478
        %v480 = vsel %vm476, %v445, 0.0
        %481 = vadd.xlane.f32.xlu0 %v480
        %v482 = vpop.xlane.xlu0 %481
        %v483 = vsel %vm476, %v446, 0.0
        %484 = vadd.xlane.f32.xlu0 %v483
        %v485 = vpop.xlane.xlu0 %484
        %v486 = vsel %vm476, %v447, 0.0
        %487 = vadd.xlane.f32.xlu0 %v486
        %v488 = vpop.xlane.xlu0 %487
        %v489 = vsel %vm476, %v448, 0.0
        %490 = vadd.xlane.f32.xlu0 %v489
        %v491 = vpop.xlane.xlu0 %490
        %v492 = vsel %vm476, %v449, 0.0
        %493 = vadd.xlane.f32.xlu0 %v492
        %v494 = vpop.xlane.xlu0 %493
        %v495 = vsel %vm476, %v450, 0.0
        %496 = vadd.xlane.f32.xlu0 %v495
        %v497 = vpop.xlane.xlu0 %496
        %v498 = vsel %vm476, %v451, 0.0
        %499 = vadd.xlane.f32.xlu0 %v498
        %v500 = vpop.xlane.xlu0 %499
        %v501 = vsel %vm476, %v452, 0.0
        %502 = vadd.xlane.f32.xlu0 %v501
        %v503 = vpop.xlane.xlu0 %502
        %v504 = vsel %vm476, %v453, 0.0
        %505 = vadd.xlane.f32.xlu0 %v504
        %v506 = vpop.xlane.xlu0 %505
        %v507 = vsel %vm476, %v454, 0.0
        %508 = vadd.xlane.f32.xlu0 %v507
        %v509 = vpop.xlane.xlu0 %508
        %v510 = vsel %vm476, %v455, 0.0
        %511 = vadd.xlane.f32.xlu0 %v510
        %v512 = vpop.xlane.xlu0 %511
        %v513 = vsel %vm476, %v456, 0.0
        %514 = vadd.xlane.f32.xlu0 %v513
        %v515 = vpop.xlane.xlu0 %514
        %v516 = vsel %vm476, %v457, 0.0
        %517 = vadd.xlane.f32.xlu0 %v516
        %v518 = vpop.xlane.xlu0 %517
        %v519 = vsel %vm476, %v458, 0.0
        %520 = vadd.xlane.f32.xlu0 %v519
        %v521 = vpop.xlane.xlu0 %520
        %v522 = vsel %vm476, %v459, 0.0
        %523 = vadd.xlane.f32.xlu0 %v522
        %v524 = vpop.xlane.xlu0 %523
        %v525 = vsel %vm476, %v460, 0.0
        %526 = vadd.xlane.f32.xlu0 %v525
        %v527 = vpop.xlane.xlu0 %526
        %v528 = vsel %vm476, %v461, 0.0
        %529 = vadd.xlane.f32.xlu0 %v528
        %v530 = vpop.xlane.xlu0 %529
        %v531 = vsel %vm476, %v462, 0.0
        %532 = vadd.xlane.f32.xlu0 %v531
        %v533 = vpop.xlane.xlu0 %532
        %v534 = vsel %vm476, %v463, 0.0
        %535 = vadd.xlane.f32.xlu0 %v534
        %v536 = vpop.xlane.xlu0 %535
        %v537 = vsel %vm476, %v464, 0.0
        %538 = vadd.xlane.f32.xlu0 %v537
        %v539 = vpop.xlane.xlu0 %538
        %v540 = vsel %vm476, %v465, 0.0
        %541 = vadd.xlane.f32.xlu0 %v540
        %v542 = vpop.xlane.xlu0 %541
        %v543 = vsel %vm476, %v466, 0.0
        %544 = vadd.xlane.f32.xlu0 %v543
        %v545 = vpop.xlane.xlu0 %544
        %v546 = vsel %vm476, %v467, 0.0
        %547 = vadd.xlane.f32.xlu0 %v546
        %v548 = vpop.xlane.xlu0 %547
        %v549 = vsel %vm476, %v468, 0.0
        %550 = vadd.xlane.f32.xlu0 %v549
        %v551 = vpop.xlane.xlu0 %550
        %v552 = vsel %vm476, %v469, 0.0
        %553 = vadd.xlane.f32.xlu0 %v552
        %v554 = vpop.xlane.xlu0 %553
        %v555 = vsel %vm476, %v470, 0.0
        %556 = vadd.xlane.f32.xlu0 %v555
        %v557 = vpop.xlane.xlu0 %556
        %v558 = vsel %vm476, %v471, 0.0
        %559 = vadd.xlane.f32.xlu0 %v558
        %v560 = vpop.xlane.xlu0 %559
        %v561 = vsel %vm476, %v472, 0.0
        %562 = vadd.xlane.f32.xlu0 %v561
        %v563 = vpop.xlane.xlu0 %562
        %v564 = vsel %vm476, %v473, 0.0
        %565 = vadd.xlane.f32.xlu0 %v564
        %v566 = vpop.xlane.xlu0 %565
        %v567 = vsel %vm476, %v474, 0.0
        %568 = vadd.xlane.f32.xlu0 %v567
        %v569 = vpop.xlane.xlu0 %568
        %v570 = vsel %vm476, %v475, 0.0
        %571 = vadd.xlane.f32.xlu0 %v570
        %v572 = vpop.xlane.xlu0 %571
        %v573 = vld [vmem:[#allocation2] sm:$0xff]
        %v574 = vld [vmem:[%s409] sm:$0xff]
        %v575 = vld [vmem:[%s409 + $0x8] sm:$0xff]
        %v576 = vld [vmem:[%s409 + $0x10] sm:$0xff]
        %v577 = vld [vmem:[%s409 + $0x18] sm:$0xff]
        %v578 = vld [vmem:[%s409 + $0x20] sm:$0xff]
        %v579 = vld [vmem:[%s409 + $0x28] sm:$0xff]
        %v580 = vld [vmem:[%s409 + $0x30] sm:$0xff]
        %v581 = vld [vmem:[%s409 + $0x38] sm:$0xff]
        %v582 = vld [vmem:[%s409 + $0x40] sm:$0xff]
        %v583 = vld [vmem:[%s409 + $0x48] sm:$0xff]
        %v584 = vld [vmem:[%s409 + $0x50] sm:$0xff]
        %v585 = vld [vmem:[%s409 + $0x58] sm:$0xff]
        %v586 = vld [vmem:[%s409 + $0x60] sm:$0xff]
        %v587 = vld [vmem:[%s409 + $0x68] sm:$0xff]
        %v588 = vld [vmem:[%s409 + $0x70] sm:$0xff]
        %v589 = vld [vmem:[%s409 + $0x78] sm:$0xff]
        %v590 = vld [vmem:[%s409 + $0x80] sm:$0xff]
        %v591 = vld [vmem:[%s409 + $0x88] sm:$0xff]
        %v592 = vld [vmem:[%s409 + $0x90] sm:$0xff]
        %v593 = vld [vmem:[%s409 + $0x98] sm:$0xff]
        %v594 = vld [vmem:[%s409 + $0xa0] sm:$0xff]
        %v595 = vld [vmem:[%s409 + $0xa8] sm:$0xff]
        %v596 = vld [vmem:[%s409 + $0xb0] sm:$0xff]
        %v597 = vld [vmem:[%s409 + $0xb8] sm:$0xff]
        %v598 = vld [vmem:[%s409 + $0xc0] sm:$0xff]
        %v599 = vld [vmem:[%s409 + $0xc8] sm:$0xff]
        %v600 = vld [vmem:[%s409 + $0xd0] sm:$0xff]
        %v601 = vld [vmem:[%s409 + $0xd8] sm:$0xff]
        %v602 = vld [vmem:[%s409 + $0xe0] sm:$0xff]
        %v603 = vld [vmem:[%s409 + $0xe8] sm:$0xff]
        %v604 = vld [vmem:[%s409 + $0xf0] sm:$0xff]
        %v605 = vld [vmem:[%s409 + $0xf8] sm:$0xff]
        %v606 = vld [vmem:[%s409 + $0x100] sm:$0xff]
        %v607 = vld [vmem:[%s409 + $0x108] sm:$0xff]
        %v608 = vld [vmem:[%s409 + $0x110] sm:$0xff]
        %v609 = vld [vmem:[%s409 + $0x118] sm:$0xff]
        %v610 = vld [vmem:[%s409 + $0x120] sm:$0xff]
        %v611 = vld [vmem:[%s409 + $0x128] sm:$0xff]
        %v612 = vld [vmem:[%s409 + $0x130] sm:$0xff]
        %v613 = vld [vmem:[%s409 + $0x138] sm:$0xff]
        %v614 = vld [vmem:[%s409 + $0x140] sm:$0xff]
        %v615 = vld [vmem:[%s409 + $0x148] sm:$0xff]
        %v616 = vld [vmem:[%s409 + $0x150] sm:$0xff]
        %v617 = vld [vmem:[%s409 + $0x158] sm:$0xff]
        %v618 = vld [vmem:[%s409 + $0x160] sm:$0xff]
        %v619 = vld [vmem:[%s409 + $0x168] sm:$0xff]
        %v620 = vld [vmem:[%s409 + $0x170] sm:$0xff]
        %v621 = vld [vmem:[%s409 + $0x178] sm:$0xff]
        %v622 = vld [vmem:[%s409 + $0x180] sm:$0xff]
        %v623 = vld [vmem:[%s409 + $0x188] sm:$0xff]
        %v624 = vld [vmem:[%s409 + $0x190] sm:$0xff]
        %v625 = vld [vmem:[%s409 + $0x198] sm:$0xff]
        %v626 = vld [vmem:[%s409 + $0x1a0] sm:$0xff]
        %v627 = vld [vmem:[%s409 + $0x1a8] sm:$0xff]
        %v628 = vld [vmem:[%s409 + $0x1b0] sm:$0xff]
        %v629 = vld [vmem:[%s409 + $0x1b8] sm:$0xff]
        %v630 = vld [vmem:[%s409 + $0x1c0] sm:$0xff]
        %v631 = vld [vmem:[%s409 + $0x1c8] sm:$0xff]
        %v632 = vld [vmem:[%s409 + $0x1d0] sm:$0xff]
        %v633 = vld [vmem:[%s409 + $0x1d8] sm:$0xff]
        %v634 = vld [vmem:[%s409 + $0x1e0] sm:$0xff]
        %v635 = vld [vmem:[%s409 + $0x1e8] sm:$0xff]
        %v636 = vld [vmem:[%s409 + $0x1f0] sm:$0xff]
        %v637 = vld [vmem:[%s409 + $0x1f8] sm:$0xff]
        %v670 = vlaneseq
        %v671 = vand.u32 %v670, 127
        %v672 = vperm.slane %v479, %v671
        %v673 = vadd.s32 %v671, 4294967288
        %v674 = vperm.slane %v482, %v673
        %vm675 = vcmask 130112
        %v676 = vsel %vm675, %v674, %v672
        %v677 = vadd.s32 %v671, 4294967280
        %v678 = vperm.slane %v485, %v677
        %vm679 = vcmask 195712
        %v680 = vsel %vm679, %v678, %v676
        %v681 = vadd.s32 %v671, 4294967272
        %v682 = vperm.slane %v488, %v681
        %vm683 = vcmask 261312
        %v684 = vsel %vm683, %v682, %v680
        %v685 = vadd.s32 %v671, 4294967264
        %v686 = vperm.slane %v491, %v685
        %vm687 = vcmask 326912
        %v688 = vsel %vm687, %v686, %v684
        %v689 = vadd.s32 %v671, 4294967256
        %v690 = vperm.slane %v494, %v689
        %vm691 = vcmask 392512
        %v692 = vsel %vm691, %v690, %v688
        %v693 = vadd.s32 %v671, 4294967248
        %v694 = vperm.slane %v497, %v693
        %vm695 = vcmask 458112
        %v696 = vsel %vm695, %v694, %v692
        %v697 = vadd.s32 %v671, 4294967240
        %v698 = vperm.slane %v500, %v697
        %vm699 = vcmask 523712
        %v700 = vsel %vm699, %v698, %v696
        %v701 = vadd.s32 %v671, 4294967232
        %v702 = vperm.slane %v503, %v701
        %vm703 = vcmask 589312
        %v704 = vsel %vm703, %v702, %v700
        %v705 = vadd.s32 %v671, 4294967224
        %v706 = vperm.slane %v506, %v705
        %vm707 = vcmask 654912
        %v708 = vsel %vm707, %v706, %v704
        %v709 = vadd.s32 %v671, 4294967216
        %v710 = vperm.slane %v509, %v709
        %vm711 = vcmask 720512
        %v712 = vsel %vm711, %v710, %v708
        %v713 = vadd.s32 %v671, 4294967208
        %v714 = vperm.slane %v512, %v713
        %vm715 = vcmask 786112
        %v716 = vsel %vm715, %v714, %v712
        %v717 = vadd.s32 %v671, 4294967200
        %v718 = vperm.slane %v515, %v717
        %vm719 = vcmask 851712
        %v720 = vsel %vm719, %v718, %v716
        %v721 = vadd.s32 %v671, 4294967192
        %v722 = vperm.slane %v518, %v721
        %vm723 = vcmask 917312
        %v724 = vsel %vm723, %v722, %v720
        %v725 = vadd.s32 %v671, 4294967184
        %v726 = vperm.slane %v521, %v725
        %vm727 = vcmask 982912
        %v728 = vsel %vm727, %v726, %v724
        %v729 = vadd.s32 %v671, 4294967176
        %v730 = vperm.slane %v524, %v729
        %vm731 = vcmask 1048512
        %v732 = vsel %vm731, %v730, %v728
        %v733 = vperm.slane %v527, %v671
        %v734 = vperm.slane %v530, %v673
        %v735 = vsel %vm675, %v734, %v733
        %v736 = vperm.slane %v533, %v677
        %v737 = vsel %vm679, %v736, %v735
        %v738 = vperm.slane %v536, %v681
        %v739 = vsel %vm683, %v738, %v737
        %v740 = vperm.slane %v539, %v685
        %v741 = vsel %vm687, %v740, %v739
        %v742 = vperm.slane %v542, %v689
        %v743 = vsel %vm691, %v742, %v741
        %v744 = vperm.slane %v545, %v693
        %v745 = vsel %vm695, %v744, %v743
        %v746 = vperm.slane %v548, %v697
        %v747 = vsel %vm699, %v746, %v745
        %v748 = vperm.slane %v551, %v701
        %v749 = vsel %vm703, %v748, %v747
        %v750 = vperm.slane %v554, %v705
        %v751 = vsel %vm707, %v750, %v749
        %v752 = vperm.slane %v557, %v709
        %v753 = vsel %vm711, %v752, %v751
        %v754 = vperm.slane %v560, %v713
        %v755 = vsel %vm715, %v754, %v753
        %v756 = vperm.slane %v563, %v717
        %v757 = vsel %vm719, %v756, %v755
        %v758 = vperm.slane %v566, %v721
        %v759 = vsel %vm723, %v758, %v757
        %v760 = vperm.slane %v569, %v725
        %v761 = vsel %vm727, %v760, %v759
        %v762 = vperm.slane %v572, %v729
        %v763 = vsel %vm731, %v762, %v761
        %vm764 = vcmask 1041409
        %v765 = vsel %vm764, %v763, %v732
        %767 = vmatpush.msra.mxu0 %v634
        %768 = vmatpush.msra.mxu0 %v630
        %769 = vmatpush.msra.mxu0 %v626
        %770 = vmatpush.msra.mxu0 %v622
        %771 = vmatpush.msra.mxu0 %v618
        %772 = vmatpush.msra.mxu0 %v614
        %773 = vmatpush.msra.mxu0 %v610
        %774 = vmatpush.msra.mxu0 %v606
        %775 = vmatpush.msra.mxu0 %v602
        %776 = vmatpush.msra.mxu0 %v598
        %777 = vmatpush.msra.mxu0 %v594
        %778 = vmatpush.msra.mxu0 %v590
        %779 = vmatpush.msra.mxu0 %v586
        %780 = vmatpush.msra.mxu0 %v582
        %781 = vmatpush.msra.mxu0 %v578
        %782 = vmatpush.msra.mxu0 %v574
        %783 = vmatmul.f32.gmra.mxu0 %v765
        %v784 = vpop.f32.mrf.mxu0
        %v785 = vadd.f32 0.0, %v784
        %786 = vdwg.mxu0
        %787 = vmatpush.msra.mxu0 %v635
        %788 = vmatpush.msra.mxu0 %v631
        %789 = vmatpush.msra.mxu0 %v627
        %790 = vmatpush.msra.mxu0 %v623
        %791 = vmatpush.msra.mxu0 %v619
        %792 = vmatpush.msra.mxu0 %v615
        %793 = vmatpush.msra.mxu0 %v611
        %794 = vmatpush.msra.mxu0 %v607
        %795 = vmatpush.msra.mxu0 %v603
        %796 = vmatpush.msra.mxu0 %v599
        %797 = vmatpush.msra.mxu0 %v595
        %798 = vmatpush.msra.mxu0 %v591
        %799 = vmatpush.msra.mxu0 %v587
        %800 = vmatpush.msra.mxu0 %v583
        %801 = vmatpush.msra.mxu0 %v579
        %802 = vmatpush.msra.mxu0 %v575
        %803 = vmatmul.f32.gmra.mxu0 %v765
        %v804 = vpop.f32.mrf.mxu0
        %v805 = vadd.f32 0.0, %v804
        %806 = vdwg.mxu0
        %807 = vmatpush.msra.mxu0 %v636
        %808 = vmatpush.msra.mxu0 %v632
        %809 = vmatpush.msra.mxu0 %v628
        %810 = vmatpush.msra.mxu0 %v624
        %811 = vmatpush.msra.mxu0 %v620
        %812 = vmatpush.msra.mxu0 %v616
        %813 = vmatpush.msra.mxu0 %v612
        %814 = vmatpush.msra.mxu0 %v608
        %815 = vmatpush.msra.mxu0 %v604
        %816 = vmatpush.msra.mxu0 %v600
        %817 = vmatpush.msra.mxu0 %v596
        %818 = vmatpush.msra.mxu0 %v592
        %819 = vmatpush.msra.mxu0 %v588
        %820 = vmatpush.msra.mxu0 %v584
        %821 = vmatpush.msra.mxu0 %v580
        %822 = vmatpush.msra.mxu0 %v576
        %823 = vmatmul.f32.gmra.mxu0 %v765
        %v824 = vpop.f32.mrf.mxu0
        %v825 = vadd.f32 0.0, %v824
        %826 = vdwg.mxu0
        %827 = vmatpush.msra.mxu0 %v637
        %828 = vmatpush.msra.mxu0 %v633
        %829 = vmatpush.msra.mxu0 %v629
        %830 = vmatpush.msra.mxu0 %v625
        %831 = vmatpush.msra.mxu0 %v621
        %832 = vmatpush.msra.mxu0 %v617
        %833 = vmatpush.msra.mxu0 %v613
        %834 = vmatpush.msra.mxu0 %v609
        %835 = vmatpush.msra.mxu0 %v605
        %836 = vmatpush.msra.mxu0 %v601
        %837 = vmatpush.msra.mxu0 %v597
        %838 = vmatpush.msra.mxu0 %v593
        %839 = vmatpush.msra.mxu0 %v589
        %840 = vmatpush.msra.mxu0 %v585
        %841 = vmatpush.msra.mxu0 %v581
        %842 = vmatpush.msra.mxu0 %v577
        %843 = vmatmul.f32.gmra.mxu0 %v765
        %v844 = vpop.f32.mrf.mxu0
        %v845 = vadd.f32 0.0, %v844
        %846 = vdwg.mxu0
        %v851 = vrot.slane %v805, 6
        %v852 = vrot.slane %v825, 4
        %v853 = vrot.slane %v845, 2
        %vm854 = vcmask 1041408
        %v855 = vsel %vm854, %v785, %v851
        %vm856 = vcmask 1045508
        %v857 = vsel %vm856, %v852, %v853
        %vm858 = vcmask 1043456
        %v859 = vsel %vm858, %v855, %v857
        %v861 = vadd.f32 %v573, %v859
        %862 = vst [vmem:[#allocation2] sm:$0xff] %v861
        %p863 = scmp.eq.s32.totalorder %s25, 3
        // Predicated region
        $region87: #{tpu_custom_call.1} parent=73 // pred_check
          %p864 = pneg %p863
        $region88: #{tpu_custom_call.1} parent=73 // pred_check_branch
          %866 = sbr.rel (%p864) target = $region90
        $region89: #{tpu_custom_call.1} parent=73 // pred_region
          %v867 = vld [vmem:[#allocation2] sm:$0xff]
          %v868 = vld [vmem:[%s2] sm:$0xf]
          %v870 = vperm.slane %v868, 0
          %v871 = vperm.slane %v868, 1
          %v872 = vperm.slane %v868, 2
          %v873 = vperm.slane %v868, 3
          %v874 = vrot.slane %v871, 6
          %v875 = vrot.slane %v872, 4
          %v876 = vrot.slane %v873, 2
          %v877 = vsel %vm854, %v870, %v874
          %v878 = vsel %vm856, %v875, %v876
          %v879 = vsel %vm858, %v877, %v878
          %v881 = vadd.f32 %v867, %v879
          %v882 = vmax.f32 %v881, 0.0
          %v883 = vld [vmem:[%s3] sm:$0xff]
          %v884 = vld [vmem:[%s3 + $0x8] sm:$0xff]
          %v885 = vld [vmem:[%s3 + $0x10] sm:$0xff]
          %v886 = vld [vmem:[%s3 + $0x18] sm:$0xff]
          %v887 = vld [vmem:[%s3 + $0x20] sm:$0xff]
          %v888 = vld [vmem:[%s3 + $0x28] sm:$0xff]
          %v889 = vld [vmem:[%s3 + $0x30] sm:$0xff]
          %v890 = vld [vmem:[%s3 + $0x38] sm:$0xff]
          %v891 = vld [vmem:[%s3 + $0x40] sm:$0xff]
          %v892 = vld [vmem:[%s3 + $0x48] sm:$0xff]
          %v893 = vld [vmem:[%s3 + $0x50] sm:$0xff]
          %v894 = vld [vmem:[%s3 + $0x58] sm:$0xff]
          %v895 = vld [vmem:[%s3 + $0x60] sm:$0xff]
          %v896 = vld [vmem:[%s3 + $0x68] sm:$0xff]
          %v897 = vld [vmem:[%s3 + $0x70] sm:$0xff]
          %v898 = vld [vmem:[%s3 + $0x78] sm:$0xff]
          %v899 = vld [vmem:[%s3 + $0x80] sm:$0xff]
          %v900 = vld [vmem:[%s3 + $0x88] sm:$0xff]
          %v901 = vld [vmem:[%s3 + $0x90] sm:$0xff]
          %v902 = vld [vmem:[%s3 + $0x98] sm:$0xff]
          %v903 = vld [vmem:[%s3 + $0xa0] sm:$0xff]
          %v904 = vld [vmem:[%s3 + $0xa8] sm:$0xff]
          %v905 = vld [vmem:[%s3 + $0xb0] sm:$0xff]
          %v906 = vld [vmem:[%s3 + $0xb8] sm:$0xff]
          %v907 = vld [vmem:[%s3 + $0xc0] sm:$0xff]
          %v908 = vld [vmem:[%s3 + $0xc8] sm:$0xff]
          %v909 = vld [vmem:[%s3 + $0xd0] sm:$0xff]
          %v910 = vld [vmem:[%s3 + $0xd8] sm:$0xff]
          %v911 = vld [vmem:[%s3 + $0xe0] sm:$0xff]
          %v912 = vld [vmem:[%s3 + $0xe8] sm:$0xff]
          %v913 = vld [vmem:[%s3 + $0xf0] sm:$0xff]
          %v914 = vld [vmem:[%s3 + $0xf8] sm:$0xff]
          %v915 = vld [vmem:[%s3 + $0x100] sm:$0xff]
          %v916 = vld [vmem:[%s3 + $0x108] sm:$0xff]
          %v917 = vld [vmem:[%s3 + $0x110] sm:$0xff]
          %v918 = vld [vmem:[%s3 + $0x118] sm:$0xff]
          %v919 = vld [vmem:[%s3 + $0x120] sm:$0xff]
          %v920 = vld [vmem:[%s3 + $0x128] sm:$0xff]
          %v921 = vld [vmem:[%s3 + $0x130] sm:$0xff]
          %v922 = vld [vmem:[%s3 + $0x138] sm:$0xff]
          %v923 = vld [vmem:[%s3 + $0x140] sm:$0xff]
          %v924 = vld [vmem:[%s3 + $0x148] sm:$0xff]
          %v925 = vld [vmem:[%s3 + $0x150] sm:$0xff]
          %v926 = vld [vmem:[%s3 + $0x158] sm:$0xff]
          %v927 = vld [vmem:[%s3 + $0x160] sm:$0xff]
          %v928 = vld [vmem:[%s3 + $0x168] sm:$0xff]
          %v929 = vld [vmem:[%s3 + $0x170] sm:$0xff]
          %v930 = vld [vmem:[%s3 + $0x178] sm:$0xff]
          %v931 = vld [vmem:[%s3 + $0x180] sm:$0xff]
          %v932 = vld [vmem:[%s3 + $0x188] sm:$0xff]
          %v933 = vld [vmem:[%s3 + $0x190] sm:$0xff]
          %v934 = vld [vmem:[%s3 + $0x198] sm:$0xff]
          %v935 = vld [vmem:[%s3 + $0x1a0] sm:$0xff]
          %v936 = vld [vmem:[%s3 + $0x1a8] sm:$0xff]
          %v937 = vld [vmem:[%s3 + $0x1b0] sm:$0xff]
          %v938 = vld [vmem:[%s3 + $0x1b8] sm:$0xff]
          %v939 = vld [vmem:[%s3 + $0x1c0] sm:$0xff]
          %v940 = vld [vmem:[%s3 + $0x1c8] sm:$0xff]
          %v941 = vld [vmem:[%s3 + $0x1d0] sm:$0xff]
          %v942 = vld [vmem:[%s3 + $0x1d8] sm:$0xff]
          %v943 = vld [vmem:[%s3 + $0x1e0] sm:$0xff]
          %v944 = vld [vmem:[%s3 + $0x1e8] sm:$0xff]
          %v945 = vld [vmem:[%s3 + $0x1f0] sm:$0xff]
          %v946 = vld [vmem:[%s3 + $0x1f8] sm:$0xff]
          %v947 = vld [vmem:[%s4] sm:$0x1]
          %v949 = vperm.slane %v947, 0
          %952 = vst [vmem:[#allocation1] ss:$4 sm:$0xff] %v882
          %v953 = vld.sshfl [vmem:[#allocation1] sm:$0xff pattern:$0x73625140]
          %v954 = vld.sshfl [vmem:[#allocation1 + $0x8] sm:$0xff pattern:$0x73625140]
          %v955 = vld.sshfl [vmem:[#allocation1 + $0x10] sm:$0xff pattern:$0x73625140]
          %v956 = vld.sshfl [vmem:[#allocation1 + $0x18] sm:$0xff pattern:$0x73625140]
          %961 = vmatpush.msra.mxu0 %v898
          %962 = vmatpush.msra.mxu0 %v897
          %963 = vmatpush.msra.mxu0 %v896
          %964 = vmatpush.msra.mxu0 %v895
          %965 = vmatpush.msra.mxu0 %v894
          %966 = vmatpush.msra.mxu0 %v893
          %967 = vmatpush.msra.mxu0 %v892
          %968 = vmatpush.msra.mxu0 %v891
          %969 = vmatpush.msra.mxu0 %v890
          %970 = vmatpush.msra.mxu0 %v889
          %971 = vmatpush.msra.mxu0 %v888
          %972 = vmatpush.msra.mxu0 %v887
          %973 = vmatpush.msra.mxu0 %v886
          %974 = vmatpush.msra.mxu0 %v885
          %975 = vmatpush.msra.mxu0 %v884
          %976 = vmatpush.msra.mxu0 %v883
          %977 = vmatmul.f32.gmra.mxu0 %v953
          %v978 = vpop.f32.mrf.mxu0
          %v979 = vadd.f32 %v949, %v978
          %980 = vdwg.mxu0
          %981 = vmatpush.msra.mxu0 %v914
          %982 = vmatpush.msra.mxu0 %v913
          %983 = vmatpush.msra.mxu0 %v912
          %984 = vmatpush.msra.mxu0 %v911
          %985 = vmatpush.msra.mxu0 %v910
          %986 = vmatpush.msra.mxu0 %v909
          %987 = vmatpush.msra.mxu0 %v908
          %988 = vmatpush.msra.mxu0 %v907
          %989 = vmatpush.msra.mxu0 %v906
          %990 = vmatpush.msra.mxu0 %v905
          %991 = vmatpush.msra.mxu0 %v904
          %992 = vmatpush.msra.mxu0 %v903
          %993 = vmatpush.msra.mxu0 %v902
          %994 = vmatpush.msra.mxu0 %v901
          %995 = vmatpush.msra.mxu0 %v900
          %996 = vmatpush.msra.mxu0 %v899
          %997 = vmatmul.f32.gmra.mxu0 %v954
          %v998 = vpop.f32.mrf.mxu0
          %v999 = vadd.f32 %v979, %v998
          %1000 = vdwg.mxu0
          %1001 = vmatpush.msra.mxu0 %v930
          %1002 = vmatpush.msra.mxu0 %v929
          %1003 = vmatpush.msra.mxu0 %v928
          %1004 = vmatpush.msra.mxu0 %v927
          %1005 = vmatpush.msra.mxu0 %v926
          %1006 = vmatpush.msra.mxu0 %v925
          %1007 = vmatpush.msra.mxu0 %v924
          %1008 = vmatpush.msra.mxu0 %v923
          %1009 = vmatpush.msra.mxu0 %v922
          %1010 = vmatpush.msra.mxu0 %v921
          %1011 = vmatpush.msra.mxu0 %v920
          %1012 = vmatpush.msra.mxu0 %v919
          %1013 = vmatpush.msra.mxu0 %v918
          %1014 = vmatpush.msra.mxu0 %v917
          %1015 = vmatpush.msra.mxu0 %v916
          %1016 = vmatpush.msra.mxu0 %v915
          %1017 = vmatmul.f32.gmra.mxu0 %v955
          %v1018 = vpop.f32.mrf.mxu0
          %v1019 = vadd.f32 %v999, %v1018
          %1020 = vdwg.mxu0
          %1021 = vmatpush.msra.mxu0 %v946
          %1022 = vmatpush.msra.mxu0 %v945
          %1023 = vmatpush.msra.mxu0 %v944
          %1024 = vmatpush.msra.mxu0 %v943
          %1025 = vmatpush.msra.mxu0 %v942
          %1026 = vmatpush.msra.mxu0 %v941
          %1027 = vmatpush.msra.mxu0 %v940
          %1028 = vmatpush.msra.mxu0 %v939
          %1029 = vmatpush.msra.mxu0 %v938
          %1030 = vmatpush.msra.mxu0 %v937
          %1031 = vmatpush.msra.mxu0 %v936
          %1032 = vmatpush.msra.mxu0 %v935
          %1033 = vmatpush.msra.mxu0 %v934
          %1034 = vmatpush.msra.mxu0 %v933
          %1035 = vmatpush.msra.mxu0 %v932
          %1036 = vmatpush.msra.mxu0 %v931
          %1037 = vmatmul.f32.gmra.mxu0 %v956
          %v1038 = vpop.f32.mrf.mxu0
          %v1039 = vadd.f32 %v1019, %v1038
          %1040 = vdwg.mxu0
          %1041 = vst [vmem:[#allocation7] sm:$0x3] %v1039
        $region90: #{tpu_custom_call.1} parent=73 // pred_fallthru
          _
        // Predicated region
        $region91: #{tpu_custom_call.1} parent=73 // pred_check
          %p1042 = pneg %p167
        $region92: #{tpu_custom_call.1} parent=73 // pred_check_branch
          %1044 = sbr.rel (%p1042) target = $region94
        $region93: #{tpu_custom_call.1} parent=73 // pred_region
          %1046 = vsyncadd [#allocation6], 0
          %s1047 = smul.addr %s24, 2
          %s1048 = scalar_lea.hbm %s5, %s1047
          %s1050 = sshll.u32 [#allocation7], 4
          %s1051 = int_to_ptr.vmem [resolvable:$true] %s1050
          %s1052 = sshll.u32 %s1048, 4
          %s1053 = int_to_ptr.hbm [resolvable:$true] %s1052
          %1055 = dma.vmem_to_hbm [thread:$0]  %s1051, 32, %s1053, [#allocation6]
        $region94: #{tpu_custom_call.1} parent=73 // pred_fallthru
          _
        // Predicated region
        $region95: #{tpu_custom_call.1} parent=73 // pred_check
          %p1056 = pneg %p167
        $region96: #{tpu_custom_call.1} parent=73 // pred_check_branch
          %1058 = sbr.rel (%p1056) target = $region98
        $region97: #{tpu_custom_call.1} parent=73 // pred_region
          %1060 = dma.done [#allocation6], 32
        $region98: #{tpu_custom_call.1} parent=73 // pred_fallthru
          _
      $region74: #{tpu_custom_call.1} parent=5 // pred_fallthru
        _
      %p1061 = scmp.le.s32.totalorder 2, %s15
      // Predicated region
      $region99: #{tpu_custom_call.1} parent=5 // pred_check
        %p1062 = pneg %p1061
      $region100: #{tpu_custom_call.1} parent=5 // pred_check_branch
        %1064 = sbr.rel (%p1062) target = $region102
      $region101: #{tpu_custom_call.1} parent=5 // pred_region
        %s1065 = ssub.s32 %s15, 2
      $region102: #{tpu_custom_call.1} parent=5 // pred_fallthru
        _
    $region6: #{tpu_custom_call.1} parent=1 // loop_footer
      %s19 = sadd.s32 1, %s15
    $region7: #{tpu_custom_call.1} parent=1 // loop_footer_branch
      %14 = sbr.rel target = $region3
    $region8: #{tpu_custom_call.1} parent=1 // loop_exit
      _
    %1066 = vsyncpa [#allocation5], 1
    %s1067 = scalar_lea.sflag [#allocation5], 1
    %1068 = vsyncpa %s1067, 1
    %1069 = vsyncpa [#allocation6], 1
    %s1070 = scalar_lea.sflag [#allocation6], 1
    %1071 = vsyncpa %s1070, 1

</llo_original>
